<compile_context>
chip_gen: v7x
topology: tpu7x:2x2x1
jax: 0.10.0
libtpu: 0.0.40
codegen_flags: <defaults>
</compile_context>

<pallas_src>
import functools

import jax
import jax.numpy as jnp
from jax.experimental import pallas as pl
from jax.experimental.pallas import tpu as pltpu

IN_FEATURES = 16
OUT_FEATURES = 32
MAX_BATCH_TILE = 4096       # rows per grid step for large batches (~2 MiB x-buf in VMEM)

# TODO(synk): the original PyTorch module never assigns self.min_value /
# self.max_value in __init__ (it would fail at runtime); bounds below are a
# deterministic behavioral choice, not a faithful port.
MIN_VALUE = -0.5
MAX_VALUE = 0.5


def _linear_clamp_kernel(x_ref, w_ref, b_ref, o_ref, *, min_value, max_value):
    # One batch tile: MXU matmul (f32 accumulate) + bias + clamp on the VPU.
    y = jnp.dot(x_ref[...], w_ref[...], preferred_element_type=jnp.float32)
    y = y + b_ref[...]
    y = jnp.maximum(y, min_value)   # torch.clamp_min
    y = jnp.minimum(y, max_value)   # torch.clamp_max
    o_ref[...] = y.astype(o_ref.dtype)


def _round_up(x, m):
    return (x + m - 1) // m * m


@functools.partial(jax.jit, static_argnames=("min_value", "max_value"))
def linear_clamp(x, w_t, b2d, *, min_value=MIN_VALUE, max_value=MAX_VALUE):
    """x: (B, 16) f32, w_t: (16, 32) f32 (pre-transposed), b2d: (1, 32) f32 -> (B, 32)."""
    B = x.shape[0]

    # Batch tile: at least 8 sublanes, split into >=2 tiles when B is big enough
    # (both TensorCores on v7x), capped at MAX_BATCH_TILE rows.
    tile_b = min(MAX_BATCH_TILE, max(8, _round_up(pl.cdiv(B, 2), 8)))
    num_tiles = pl.cdiv(B, tile_b)   # ragged last block handled by Pallas

    kernel = functools.partial(
        _linear_clamp_kernel, min_value=min_value, max_value=max_value
    )

    cost = pl.CostEstimate(
        flops=2 * B * IN_FEATURES * OUT_FEATURES,
        transcendentals=0,
        bytes_accessed=4 * (B * IN_FEATURES
                            + IN_FEATURES * OUT_FEATURES
                            + OUT_FEATURES
                            + B * OUT_FEATURES),
    )

    return pl.pallas_call(
        kernel,
        out_shape=jax.ShapeDtypeStruct((B, OUT_FEATURES), jnp.float32),
        grid=(num_tiles,),
        in_specs=[
            pl.BlockSpec((tile_b, IN_FEATURES), lambda i: (i, 0)),        # x streams
            pl.BlockSpec((IN_FEATURES, OUT_FEATURES), lambda i: (0, 0)),  # W resident
            pl.BlockSpec((1, OUT_FEATURES), lambda i: (0, 0)),            # bias resident
        ],
        out_specs=pl.BlockSpec((tile_b, OUT_FEATURES), lambda i: (i, 0)),
        compiler_params=pltpu.CompilerParams(
            dimension_semantics=("parallel",),
        ),
        cost_estimate=cost,
    )(x, w_t, b2d)


if __name__ == "__main__":
    key = jax.random.PRNGKey(0)
    kx, kw, kb = jax.random.split(key, 3)

    # Deterministic parameter init (mimics torch.nn.Linear uniform init bound).
    bound = 1.0 / (IN_FEATURES ** 0.5)
    w = jax.random.uniform(kw, (OUT_FEATURES, IN_FEATURES), jnp.float32, -bound, bound)
    b = jax.random.uniform(kb, (OUT_FEATURES,), jnp.float32, -bound, bound)

    # Hoisted, one-time layout prep (model-load time, not per call).
    w_t = jnp.asarray(w.T)                          # (16, 32)
    b2d = jnp.asarray(b).reshape(1, OUT_FEATURES)   # (1, 32)

    # Input consistent with the module (x1 = torch.randn(1, 16)); use small B=2.
    x = jax.random.normal(kx, (2, IN_FEATURES), jnp.float32)

    out = linear_clamp(x, w_t, b2d)
    jax.block_until_ready(out)

    # Plain-JAX reference check.
    ref = jnp.clip(x @ w_t + b2d, MIN_VALUE, MAX_VALUE)
    assert out.shape == (2, OUT_FEATURES)
    assert jnp.allclose(out, ref, atol=1e-5, rtol=1e-5)

    print("KERNEL_OK")
</pallas_src>

<mosaic_0001>
module attributes {stable_mosaic.version = 11 : i64} {
  func.func @_linear_clamp_kernel(%arg0: i32, %arg1: memref<8x16xf32, #tpu.memory_space<vmem>>, %arg2: memref<16x32xf32, #tpu.memory_space<vmem>>, %arg3: memref<1x32xf32, #tpu.memory_space<vmem>>, %arg4: memref<8x32xf32, #tpu.memory_space<vmem>>) attributes {dimension_semantics = [#tpu.dimension_semantics<parallel>], iteration_bounds = array<i64: 1>, scalar_prefetch = 0 : i64, scratch_operands = 0 : i64, tpu.core_type = #tpu.core_type<tc>, window_params = [{transform_indices = @transform_0, window_bounds = array<i64: 8, 16>}, {pipeline_mode = #tpu.pipeline_mode<synchronous>, transform_indices = @transform_1, window_bounds = array<i64: 16, 32>}, {pipeline_mode = #tpu.pipeline_mode<synchronous>, transform_indices = @transform_2, window_bounds = array<i64: 1, 32>}, {transform_indices = @transform_3, window_bounds = array<i64: 8, 32>}]} {
    %c0 = arith.constant 0 : index
    %c0_0 = arith.constant 0 : index
    %0 = vector.load %arg1[%c0, %c0_0] : memref<8x16xf32, #tpu.memory_space<vmem>>, vector<8x16xf32>
    %c0_1 = arith.constant 0 : index
    %c0_2 = arith.constant 0 : index
    %1 = vector.load %arg2[%c0_1, %c0_2] : memref<16x32xf32, #tpu.memory_space<vmem>>, vector<16x32xf32>
    %cst = arith.constant dense<0.000000e+00> : vector<8x32xf32>
    %2 = tpu.matmul %0, %1, %cst {dimension_numbers = #tpu.dot_dimension_numbers<[1], [0], [0], [1], [0, 0, 1, 1], [], []>} : vector<8x16xf32>, vector<16x32xf32>, vector<8x32xf32> -> vector<8x32xf32>
    %c0_3 = arith.constant 0 : index
    %c0_4 = arith.constant 0 : index
    %3 = vector.load %arg3[%c0_3, %c0_4] : memref<1x32xf32, #tpu.memory_space<vmem>>, vector<1x32xf32>
    %4 = vector.broadcast %3 : vector<1x32xf32> to vector<8x32xf32>
    %5 = arith.addf %2, %4 : vector<8x32xf32>
    %cst_5 = arith.constant -5.000000e-01 : f32
    %6 = vector.broadcast %cst_5 : f32 to vector<8x32xf32>
    %7 = arith.maximumf %5, %6 : vector<8x32xf32>
    %cst_6 = arith.constant 5.000000e-01 : f32
    %8 = vector.broadcast %cst_6 : f32 to vector<8x32xf32>
    %9 = arith.minimumf %7, %8 : vector<8x32xf32>
    %c0_7 = arith.constant 0 : index
    %c0_8 = arith.constant 0 : index
    %10 = vector.load %arg4[%c0_7, %c0_8] : memref<8x32xf32, #tpu.memory_space<vmem>>, vector<8x32xf32>
    tpu.vector_store %arg4[%c0_7, %c0_8], %9 {strides = array<i32>} : memref<8x32xf32, #tpu.memory_space<vmem>>, vector<8x32xf32>,
    return
  }
  func.func @transform_0(%arg0: i32) -> (i32, i32) {
    %c0_i32 = arith.constant 0 : i32
    %c0_i32_0 = arith.constant 0 : i32
    return %arg0, %c0_i32 : i32, i32
  }
  func.func @transform_1(%arg0: i32) -> (i32, i32) {
    %c0_i32 = arith.constant 0 : i32
    %c0_i32_0 = arith.constant 0 : i32
    %c0_i32_1 = arith.constant 0 : i32
    return %c0_i32, %c0_i32_0 : i32, i32
  }
  func.func @transform_2(%arg0: i32) -> (i32, i32) {
    %c0_i32 = arith.constant 0 : i32
    %c0_i32_0 = arith.constant 0 : i32
    %c0_i32_1 = arith.constant 0 : i32
    return %c0_i32, %c0_i32_0 : i32, i32
  }
  func.func @transform_3(%arg0: i32) -> (i32, i32) {
    %c0_i32 = arith.constant 0 : i32
    %c0_i32_0 = arith.constant 0 : i32
    return %arg0, %c0_i32 : i32, i32
  }
}

</mosaic_0001>

<llo_original>
// kernel: linear_clamp.1
$region0: #{linear_clamp.1}
  #allocation0 [shape = 'u32[]', space=smem, size = 0x4, offset = 0x4, fixed_abs, tag = 'smem constant byte address 0x4 - core index']
  #allocation1 [shape = 'u32[144,128]{1,0:T(1,128)}', space=vmem, size = 0x12000, scoped, tag = 'internal scratch']
  %s0 = inlined_call_operand.hbm [shape: f32[2,16], index: 0, kind: input, shape index: {}]
  %s1 = inlined_call_operand.hbm [shape: f32[16,32], index: 1, kind: input, shape index: {}]
  %s2 = inlined_call_operand.vmem [shape: f32[1,32], index: 2, kind: input, shape index: {}]
  %s3 = inlined_call_operand.hbm [shape: f32[2,32], index: 3, kind: output, shape index: {}]
  %s4 = sld [smem:[#allocation0]]
  $region30: #{linear_clamp.1} parent=0
    _
  %s6 = ssub.s32 1, %s4
  %s7 = scalar_select 0, %s6, %s4
  $region1: #{linear_clamp.1} parent=0
    #allocation2 [shape = 'u8[4096]{0}', space=vmem, size = 0x1000, scoped, tag = 'input window, operand 0, single buffered']
    #allocation3 [shape = 's32[1]{0}', space=sflag, size = 0x4, scoped, tag = 'scoped memory for linear_clamp.1']
    #allocation4 [shape = 's32[1]{0}', space=sflag, size = 0x4, scoped, tag = 'scoped memory for linear_clamp.1']
    #allocation5 [shape = 'u8[8192]{0}', space=vmem, size = 0x2000, scoped, tag = 'input window, operand 1, single buffered']
    #allocation6 [shape = 's32[1]{0}', space=sflag, size = 0x4, scoped, tag = 'scoped memory for linear_clamp.1']
    #allocation7 [shape = 'u8[4096]{0}', space=vmem, size = 0x1000, scoped, tag = 'output window, operand 0, single buffered']
    %8 = vsyncpa [#allocation3], 0
    %9 = vsyncpa [#allocation6], 0
    %10 = vsyncpa [#allocation4], 0
    // Predicated region
    $region2: #{linear_clamp.1} parent=1 // pred_check
      _
    $region3: #{linear_clamp.1} parent=1 // pred_check_branch
      %12 = sbr.rel (0) target = $region5
    $region4: #{linear_clamp.1} parent=1 // pred_region
      %s14 = ssub.s32 128, 32
      %15 = vsyncadd [#allocation3], %s14
      %s16 = sshll.u32 [#allocation2], 4
      %s17 = int_to_ptr.vmem [resolvable:$true] %s16
      %22 = dma.hbm_to_vmem [thread:$0]  %s0, 32, %s17, [#allocation3], 32, 32, 2
    $region5: #{linear_clamp.1} parent=1 // pred_fallthru
      _
    // Predicated region
    $region6: #{linear_clamp.1} parent=1 // pred_check
      _
    $region7: #{linear_clamp.1} parent=1 // pred_check_branch
      %24 = sbr.rel (0) target = $region9
    $region8: #{linear_clamp.1} parent=1 // pred_region
      %s26 = ssub.s32 256, 256
      %27 = vsyncadd [#allocation6], %s26
      %s28 = sshll.u32 [#allocation5], 4
      %s29 = int_to_ptr.vmem [resolvable:$true] %s28
      %34 = dma.hbm_to_vmem [thread:$0]  %s1, 256, %s29, [#allocation6], 128, 128, 8
    $region9: #{linear_clamp.1} parent=1 // pred_fallthru
      _
    // Predicated region
    $region10: #{linear_clamp.1} parent=1 // pred_check
      _
    $region11: #{linear_clamp.1} parent=1 // pred_check_branch
      %36 = sbr.rel (0) target = $region13
    $region12: #{linear_clamp.1} parent=1 // pred_region
      _
    $region13: #{linear_clamp.1} parent=1 // pred_fallthru
      _
    // Predicated region
    $region14: #{linear_clamp.1} parent=1 // pred_check
      _
    $region15: #{linear_clamp.1} parent=1 // pred_check_branch
      %38 = sbr.rel (0) target = $region17
    $region16: #{linear_clamp.1} parent=1 // pred_region
      %39 = dma.done [#allocation3], 128
    $region17: #{linear_clamp.1} parent=1 // pred_fallthru
      _
    // Predicated region
    $region18: #{linear_clamp.1} parent=1 // pred_check
      _
    $region19: #{linear_clamp.1} parent=1 // pred_check_branch
      %41 = sbr.rel (0) target = $region21
    $region20: #{linear_clamp.1} parent=1 // pred_region
      %42 = dma.done [#allocation6], 256
    $region21: #{linear_clamp.1} parent=1 // pred_fallthru
      _
    %v43 = vld [vmem:[#allocation2] sm:$0xff]
    %v44 = vld [vmem:[#allocation5] sm:$0xff]
    %v45 = vld [vmem:[#allocation5 + $0x8] sm:$0xff]
    %v46 = vld [vmem:[%s2] sm:$0x1]
    %v48 = vlaneseq
    %v49 = vshrl.u32 %v48, 7
    %v50 = vsub.s32 0, %v49
    %v51 = vrot.slane %v46, %v50
    %vm53 = vcmask 130048
    %v55 = vsel %vm53, %v43, 0
    %57 = vmatprep.subr.mxu0 0.0
    %58 = vmatpush1.msra.mxu0 %v44
    %59 = vmatprep.subr.mxu0 0.0
    %60 = vmatpush1.msra.mxu0 %v45
    %61 = vmatprep.subr.mxu0 0.0
    %62 = vmatpush1.msra.mxu0 0.0
    %63 = vmatprep.subr.mxu0 0.0
    %64 = vmatpush1.msra.mxu0 0.0
    %65 = vmatprep.subr.mxu0 0.0
    %66 = vmatpush1.msra.mxu0 0.0
    %67 = vmatprep.subr.mxu0 0.0
    %68 = vmatpush1.msra.mxu0 0.0
    %69 = vmatprep.subr.mxu0 0.0
    %70 = vmatpush1.msra.mxu0 0.0
    %71 = vmatprep.subr.mxu0 0.0
    %72 = vmatpush1.msra.mxu0 0.0
    %73 = vmatprep.subr.mxu0 0.0
    %74 = vmatpush1.msra.mxu0 0.0
    %75 = vmatprep.subr.mxu0 0.0
    %76 = vmatpush1.msra.mxu0 0.0
    %77 = vmatprep.subr.mxu0 0.0
    %78 = vmatpush1.msra.mxu0 0.0
    %79 = vmatprep.subr.mxu0 0.0
    %80 = vmatpush1.msra.mxu0 0.0
    %81 = vmatprep.subr.mxu0 0.0
    %82 = vmatpush1.msra.mxu0 0.0
    %83 = vmatprep.subr.mxu0 0.0
    %84 = vmatpush1.msra.mxu0 0.0
    %85 = vmatprep.subr.mxu0 0.0
    %86 = vmatpush1.msra.mxu0 0.0
    %87 = vmatprep.subr.mxu0 0.0
    %88 = vmatpush1.msra.mxu0 0.0
    %89 = vmatprep.subr.mxu0 0.0
    %90 = vmatpush1.msra.mxu0 0.0
    %91 = vmatprep.subr.mxu0 0.0
    %92 = vmatpush1.msra.mxu0 0.0
    %93 = vmatprep.subr.mxu0 0.0
    %94 = vmatpush1.msra.mxu0 0.0
    %95 = vmatprep.subr.mxu0 0.0
    %96 = vmatpush1.msra.mxu0 0.0
    %97 = vmatprep.subr.mxu0 0.0
    %98 = vmatpush1.msra.mxu0 0.0
    %99 = vmatprep.subr.mxu0 0.0
    %100 = vmatpush1.msra.mxu0 0.0
    %101 = vmatprep.subr.mxu0 0.0
    %102 = vmatpush1.msra.mxu0 0.0
    %103 = vmatprep.subr.mxu0 0.0
    %104 = vmatpush1.msra.mxu0 0.0
    %105 = vmatprep.subr.mxu0 0.0
    %106 = vmatpush1.msra.mxu0 0.0
    %107 = vmatprep.subr.mxu0 0.0
    %108 = vmatpush1.msra.mxu0 0.0
    %109 = vmatprep.subr.mxu0 0.0
    %110 = vmatpush1.msra.mxu0 0.0
    %111 = vmatprep.subr.mxu0 0.0
    %112 = vmatpush1.msra.mxu0 0.0
    %113 = vmatprep.subr.mxu0 0.0
    %114 = vmatpush1.msra.mxu0 0.0
    %115 = vmatprep.subr.mxu0 0.0
    %116 = vmatpush1.msra.mxu0 0.0
    %117 = vmatprep.subr.mxu0 0.0
    %118 = vmatpush1.msra.mxu0 0.0
    %119 = vmatprep.subr.mxu0 0.0
    %120 = vmatpush1.msra.mxu0 0.0
    %121 = vmatprep.mubr.f32.mxu0 0.0
    %122 = vmatmul.mubr.f32.gmra.mrb[0].mxu0 %v55
    %v123 = vpop.f32.mrb[0].mxu0
    %v124 = vadd.f32 %v51, %v123
    %v125 = vpop.f32.mrb[0].mxu0
    %126 = vdwg.mxu0
    %v127 = vmax.f32 %v124, -0.5
    %v128 = vmin.f32 %v127, 0.5
    %vm129 = vcmask 261120
    %130 = vst.msk [vmem:[#allocation7] sm:$0xff] %vm129, %v128
    // Predicated region
    $region22: #{linear_clamp.1} parent=1 // pred_check
      _
    $region23: #{linear_clamp.1} parent=1 // pred_check_branch
      %132 = sbr.rel (0) target = $region25
    $region24: #{linear_clamp.1} parent=1 // pred_region
      %s134 = ssub.s32 128, 32
      %135 = vsyncadd [#allocation4], %s134
      %s136 = sshll.u32 [#allocation7], 4
      %s137 = int_to_ptr.vmem [resolvable:$true] %s136
      %142 = dma.vmem_to_hbm [thread:$0]  %s137, 32, %s3, [#allocation4], 32, 32, 2
    $region25: #{linear_clamp.1} parent=1 // pred_fallthru
      _
    // Predicated region
    $region26: #{linear_clamp.1} parent=1 // pred_check
      _
    $region27: #{linear_clamp.1} parent=1 // pred_check_branch
      %144 = sbr.rel (0) target = $region29
    $region28: #{linear_clamp.1} parent=1 // pred_region
      %145 = dma.done [#allocation4], 128
    $region29: #{linear_clamp.1} parent=1 // pred_fallthru
      _
    %146 = vsyncpa [#allocation3], 1
    %147 = vsyncpa [#allocation6], 1
    %148 = vsyncpa [#allocation4], 1

</llo_original>
